<compile_context>
chip_gen: v5e
topology: v5e:2x2
jax: 0.10.0
libtpu: 0.0.40
codegen_flags: <defaults>
</compile_context>

<pallas_src>
import functools
import math

import jax
import jax.numpy as jnp
from jax.experimental import pallas as pl
from jax.experimental.pallas import tpu as pltpu


# Set to jnp.bfloat16 on v6e/v7x for ~2x MXU throughput and half the weight
# DMA bytes (all matmuls accumulate in f32 either way); kept at f32 here so
# the strict numerical check against the f32 reference passes everywhere.
MM_DTYPE = jnp.float32


def _round_up(n, m):
    return (n + m - 1) // m * m


# ----------------------------- Pallas kernels ------------------------------ #

def _step_stream_kernel(hot_ref, x_ref, ctx_ref, xmask_ref, cmask_ref,
                        w_in_ref, w_kv_ref, w2_ref, b1_ref, b2_ref,
                        o_ref, acc_ref, *,
                        hidden, ffsize, seg, batch, scale, eps):
    """One full Cell step for one stream.

    grid = (n_branches,)  -- branch axis is a reduction; the hot-weighted
    branch outputs are accumulated in `acc_ref` and LayerNorm'd into `o_ref`
    on the last branch.

    hot_ref:   SMEM f32[n_branches*3] architecture weights (hot rows)
    x_ref:     (B*Sx, H) query-side sequence of this branch (batch collapsed)
    ctx_ref:   (B*Sc, H) key/value-side sequence (guided attention)
    xmask_ref: (B, Sx) key padding mask for x (self attention)
    cmask_ref: (B, Sc) key padding mask for ctx (guided attention)
    w_in_ref:  (H, 4*seg+F) packed, 128-lane-aligned segments
               [Wq_sa | Wk_sa | Wv_sa@Wo_sa | Wq_ga | W1_ffn]
    w_kv_ref:  (H, 2*seg) packed [Wk_ga | Wv_ga@Wo_ga]
    """
    H, F, B = hidden, ffsize, batch
    Sx = x_ref.shape[0] // B
    Sc = ctx_ref.shape[0] // B
    j = pl.program_id(0)
    n_br = pl.num_programs(0)

    x = x_ref[...]                                    # (B*Sx, H)
    ctx = ctx_ref[...]                                # (B*Sc, H)

    # One fused input GEMM (M = B*Sx) for all query-side projections + FFN
    # hidden.  Each segment starts on a 128-lane tile boundary.
    big = jnp.dot(x, w_in_ref[...], preferred_element_type=jnp.float32)
    q_sa = big[:, 0:H]
    k_sa = big[:, seg:seg + H]
    v_sa = big[:, 2 * seg:2 * seg + H]                # output-projected values
    q_ga = big[:, 3 * seg:3 * seg + H]
    h_ffn = jnp.maximum(big[:, 4 * seg:4 * seg + F] + b1_ref[...], 0.0)

    # One fused GEMM for guided-attention K and (output-projected) V.
    kv = jnp.dot(ctx, w_kv_ref[...], preferred_element_type=jnp.float32)
    k_ga = kv[:, 0:H]
    v_ga = kv[:, seg:seg + H]

    # FFN second GEMM (the only epilogue GEMM left; Wo's are folded into V).
    ffn = (jnp.dot(h_ffn.astype(w2_ref.dtype), w2_ref[...],
                   preferred_element_type=jnp.float32) + b2_ref[...])

    # Hot-row scalars for this branch, read once from SMEM.
    h0 = hot_ref[3 * j + 0]
    h1 = hot_ref[3 * j + 1]
    h2 = hot_ref[3 * j + 2]

    def att(q, k, v, mask):
        # contract last dims directly (no explicit transpose of k)
        s = jax.lax.dot_general(q, k, (((1,), (1,)), ((), ())),
                                preferred_element_type=jnp.float32) * scale
        s = s + mask * (-1e9)                         # broadcast over queries
        s = s - jnp.max(s, axis=-1, keepdims=True)
        p = jnp.exp(s)
        p = p * pl.reciprocal(jnp.sum(p, axis=-1, keepdims=True), approx=True)
        return jnp.dot(p, v, preferred_element_type=jnp.float32)

    @pl.when(j == 0)
    def _():
        acc_ref[...] = jnp.zeros_like(acc_ref)

    # Tiny static per-batch unroll: attention scores must not mix batches.
    for b in range(B):
        x0, x1 = b * Sx, (b + 1) * Sx
        c0, c1 = b * Sc, (b + 1) * Sc
        a_sa = att(q_sa[x0:x1], k_sa[x0:x1], v_sa[x0:x1],
                   xmask_ref[b:b + 1, :])
        a_ga = att(q_ga[x0:x1], k_ga[c0:c1], v_ga[c0:c1],
                   cmask_ref[b:b + 1, :])
        acc_ref[x0:x1, :] += h0 * a_sa + h1 * a_ga + h2 * ffn[x0:x1]

    # Fused feats_sum + LayerNorm (no affine) on the last branch.
    @pl.when(j == n_br - 1)
    def _():
        a = acc_ref[...]
        mu = jnp.mean(a, axis=-1, keepdims=True)
        c = a - mu
        var = jnp.mean(c * c, axis=-1, keepdims=True)
        o_ref[...] = (c * jax.lax.rsqrt(var + eps)).astype(o_ref.dtype)


def _init_stream_kernel(x0_ref, x1_ref,
                        w1a_ref, b1a_ref, w2a_ref, b2a_ref,
                        w1b_ref, b1b_ref, w2b_ref, b2b_ref, o_ref):
    """Init state for one stream: 0.5*(PFFN_a(x0) + PFFN_b(x1)), batch
    collapsed into M = B*S.  Single grid point, whole arrays in VMEM."""
    h0 = jnp.maximum(
        jnp.dot(x0_ref[...], w1a_ref[...],
                preferred_element_type=jnp.float32) + b1a_ref[...], 0.0)
    y0 = jnp.dot(h0.astype(w2a_ref.dtype), w2a_ref[...],
                 preferred_element_type=jnp.float32) + b2a_ref[...]
    h1 = jnp.maximum(
        jnp.dot(x1_ref[...], w1b_ref[...],
                preferred_element_type=jnp.float32) + b1b_ref[...], 0.0)
    y1 = jnp.dot(h1.astype(w2b_ref.dtype), w2b_ref[...],
                 preferred_element_type=jnp.float32) + b2b_ref[...]
    o_ref[...] = (0.5 * (y0 + y1)).astype(o_ref.dtype)


# ------------------------------- wrappers ---------------------------------- #

def step_stream(ws, x_list, ctx_list, x_mask, ctx_mask, hot_rows, *,
                eps=1e-5, mm_dtype=MM_DTYPE):
    """curr = LayerNorm( sum_j hot[j,0]*self_att_j(x_j)
                               + hot[j,1]*guided_att_j(x_j, ctx_j)
                               + hot[j,2]*ffn_j(x_j) )
    computed in a SINGLE pallas_call (grid over branches)."""
    N = ws["w_in"].shape[0]
    assert len(x_list) == N and len(ctx_list) == N
    B, Sx, H = x_list[0].shape
    Sc = ctx_list[0].shape[1]
    F = ws["b1"].shape[-1]
    Win = ws["w_in"].shape[-1]
    Wkv = ws["w_kv"].shape[-1]
    seg = _round_up(H, 128)

    x_stack = jnp.stack(x_list).reshape(N, B * Sx, H).astype(mm_dtype)
    ctx_stack = jnp.stack(ctx_list).reshape(N, B * Sc, H).astype(mm_dtype)
    xm = x_mask.reshape(B, Sx).astype(jnp.float32)
    cm = ctx_mask.reshape(B, Sc).astype(jnp.float32)
    hot = hot_rows.reshape(-1).astype(jnp.float32)          # (N*3,) -> SMEM

    kern = functools.partial(_step_stream_kernel, hidden=H, ffsize=F, seg=seg,
                             batch=B, scale=1.0 / math.sqrt(H), eps=eps)
    out = pl.pallas_call(
        kern,
        out_shape=jax.ShapeDtypeStruct((B * Sx, H), jnp.float32),
        grid=(N,),                                          # branch reduction
        in_specs=[
            pl.BlockSpec(memory_space=pltpu.MemorySpace.SMEM),     # hot rows
            pl.BlockSpec((None, B * Sx, H), lambda j: (j, 0, 0)),  # x
            pl.BlockSpec((None, B * Sc, H), lambda j: (j, 0, 0)),  # ctx
            pl.BlockSpec((B, Sx), lambda j: (0, 0)),               # x mask
            pl.BlockSpec((B, Sc), lambda j: (0, 0)),               # ctx mask
            pl.BlockSpec((None, H, Win), lambda j: (j, 0, 0)),     # w_in
            pl.BlockSpec((None, H, Wkv), lambda j: (j, 0, 0)),     # w_kv
            pl.BlockSpec((None, F, H), lambda j: (j, 0, 0)),       # ffn w2
            pl.BlockSpec((None, 1, F), lambda j: (j, 0, 0)),       # ffn b1
            pl.BlockSpec((None, 1, H), lambda j: (j, 0, 0)),       # ffn b2
        ],
        out_specs=pl.BlockSpec((B * Sx, H), lambda j: (0, 0)),
        scratch_shapes=[pltpu.VMEM((B * Sx, H), jnp.float32)],
        compiler_params=pltpu.CompilerParams(
            dimension_semantics=("arbitrary",)),
    )(hot, x_stack, ctx_stack, xm, cm,
      ws["w_in"].astype(mm_dtype), ws["w_kv"].astype(mm_dtype),
      ws["w2"].astype(mm_dtype), ws["b1"], ws["b2"])
    return out.reshape(B, Sx, H)


def init_state_stream(x_pre_prev, x_prev, pffn0, pffn1, *, mm_dtype=MM_DTYPE):
    B, S, H = x_pre_prev.shape
    x0 = x_pre_prev.reshape(B * S, H).astype(mm_dtype)
    x1 = x_prev.reshape(B * S, H).astype(mm_dtype)
    w1a, b1a, w2a, b2a = pffn0
    w1b, b1b, w2b, b2b = pffn1
    out = pl.pallas_call(
        _init_stream_kernel,
        out_shape=jax.ShapeDtypeStruct((B * S, H), jnp.float32),
    )(x0, x1,
      w1a.astype(mm_dtype), b1a, w2a.astype(mm_dtype), b2a,
      w1b.astype(mm_dtype), b1b, w2b.astype(mm_dtype), b2b)
    return out.reshape(B, S, H)


# ----------------------------- MixedOps / Cell ------------------------------ #

def cell_forward(pparams, f_pre_prev, f_prev, masks, i_hot_vec, q_hot_vec,
                 num_step, mm_dtype=MM_DTYPE):
    # _compute_init_state: both PFFNs + mean fused, one call per stream.
    fts_0 = tuple(
        init_state_stream(f_pre_prev[k], f_prev[k],
                          pparams["pre0"][k], pparams["pre1"][k],
                          mm_dtype=mm_dtype)
        for k in range(2))
    states = [fts_0]
    xm, ym = masks                         # img-stream mask, ques-stream mask
    offset = 0
    for s in range(num_step):
        n = len(states)
        ws = pparams["steps"][s]
        i_hot = i_hot_vec[offset:offset + n]
        q_hot = q_hot_vec[offset:offset + n]
        # i-stream: x = state[0] (img side), ctx = state[1] (ques side)
        curr_i = step_stream(ws["i"],
                             [st[0] for st in states], [st[1] for st in states],
                             xm, ym, i_hot, mm_dtype=mm_dtype)
        # q-stream: x = state[1], ctx = state[0]  (inputs[::-1], masks[::-1])
        curr_q = step_stream(ws["q"],
                             [st[1] for st in states], [st[0] for st in states],
                             ym, xm, q_hot, mm_dtype=mm_dtype)
        offset += n
        states.append((curr_i, curr_q))
    last = states[-num_step:]
    # final feats_mean stays in XLA: two tiny fused elementwise ops.
    return tuple(sum(st[k] for st in last) / float(num_step) for k in range(2))


# ------------------------------- parameters -------------------------------- #

def init_params(key, H, F, num_mops):
    def dense(k, shape):
        return 0.05 * jax.random.normal(k, shape, jnp.float32)

    def branch_params(k):
        ks = jax.random.split(k, 12)
        return {
            "sa": tuple(dense(ks[i], (H, H)) for i in range(4)),       # q k v o
            "ga": tuple(dense(ks[4 + i], (H, H)) for i in range(4)),   # q k v o
            "ffn": (dense(ks[8], (H, F)), dense(ks[9], (1, F)),
                    dense(ks[10], (F, H)), dense(ks[11], (1, H))),
        }

    def pffn_params(k):
        ks = jax.random.split(k, 4)
        return (dense(ks[0], (H, F)), dense(ks[1], (1, F)),
                dense(ks[2], (F, H)), dense(ks[3], (1, H)))

    keys = jax.random.split(key, 2 * num_mops + 4)
    params = {
        "pre0": [pffn_params(keys[0]), pffn_params(keys[1])],
        "pre1": [pffn_params(keys[2]), pffn_params(keys[3])],
        "mops": [],
    }
    for m in range(num_mops):
        params["mops"].append({
            "i": branch_params(keys[4 + 2 * m]),
            "q": branch_params(keys[5 + 2 * m]),
        })
    return params


def pack_branch(bp):
    """Pack one branch's weights into the fused-kernel layout (done once).

    * Wo is folded into Wv (p@(v@Wo) == (p@v)@Wo) so there is no per-branch
      output-projection GEMM left in the kernel.
    * Every H-wide segment of the packed input/ctx GEMMs is zero-padded to a
      128-lane tile so the in-kernel slices start on tile boundaries.
    """
    wq_sa, wk_sa, wv_sa, wo_sa = bp["sa"]
    wq_ga, wk_ga, wv_ga, wo_ga = bp["ga"]
    w1, b1, w2, b2 = bp["ffn"]
    H = wq_sa.shape[0]
    seg = _round_up(H, 128)

    def pad(w):
        return jnp.pad(w, ((0, 0), (0, seg - w.shape[1])))

    w_in = jnp.concatenate(
        [pad(wq_sa), pad(wk_sa), pad(wv_sa @ wo_sa), pad(wq_ga), w1], axis=1)
    w_kv = jnp.concatenate([pad(wk_ga), pad(wv_ga @ wo_ga)], axis=1)
    return {"w_in": w_in, "w_kv": w_kv, "w2": w2, "b1": b1, "b2": b2}


def pack_params(params, num_step):
    """Pack + stack branch weights per (step, stream) for the fused step
    kernel: each entry has a leading 'branch' axis of length (step index + 1)."""
    steps = []
    offset = 0
    for s in range(num_step):
        n = s + 1
        mops = params["mops"][offset:offset + n]
        step = {}
        for side in ("i", "q"):
            packed = [pack_branch(m[side]) for m in mops]
            step[side] = {k: jnp.stack([p[k] for p in packed])
                          for k in packed[0]}
        steps.append(step)
        offset += n
    return {"pre0": params["pre0"], "pre1": params["pre1"], "steps": steps}


# ---------------------------- pure-JAX reference --------------------------- #

def _ref_attention(x, ctx, key_mask, wq, wk, wv, wo, scale):
    q = x @ wq
    k = ctx @ wk
    v = ctx @ wv
    s = (q @ jnp.swapaxes(k, -1, -2)) * scale
    s = s + key_mask[:, None, :] * (-1e9)
    p = jax.nn.softmax(s, axis=-1)
    return (p @ v) @ wo


def _ref_ffn(x, w1, b1, w2, b2):
    return jnp.maximum(x @ w1 + b1, 0.0) @ w2 + b2


def _ref_layernorm(x, eps=1e-5):
    mu = jnp.mean(x, axis=-1, keepdims=True)
    xc = x - mu
    var = jnp.mean(xc * xc, axis=-1, keepdims=True)
    return xc * jax.lax.rsqrt(var + eps)


def _ref_branch(bp, a, b, am, bm, hot):
    scale = 1.0 / math.sqrt(a.shape[-1])
    sa = _ref_attention(a, a, am, *bp["sa"], scale)
    ga = _ref_attention(a, b, bm, *bp["ga"], scale)
    ff = _ref_ffn(a, *bp["ffn"])
    return hot[0] * sa + hot[1] * ga + hot[2] * ff


def _ref_mixed_ops(mp, inputs, masks, i_hot, q_hot):
    x, y = inputs
    xm, ym = masks
    return (_ref_branch(mp["i"], x, y, xm, ym, i_hot),
            _ref_branch(mp["q"], y, x, ym, xm, q_hot))


def _ref_cell(params, f_pre_prev, f_prev, masks, i_hot_vec, q_hot_vec,
              num_step):
    pre0 = [_ref_ffn(x, *w) for x, w in zip(f_pre_prev, params["pre0"])]
    pre1 = [_ref_ffn(x, *w) for x, w in zip(f_prev, params["pre1"])]
    states = [tuple(0.5 * (a + b) for a, b in zip(pre0, pre1))]
    offset = 0
    for _ in range(num_step):
        outs = [_ref_mixed_ops(params["mops"][offset + j], h, masks,
                               i_hot_vec[offset + j], q_hot_vec[offset + j])
                for j, h in enumerate(states)]
        curr = tuple(_ref_layernorm(sum(o[k] for o in outs)) for k in range(2))
        offset += len(states)
        states.append(curr)
    last = states[-num_step:]
    return tuple(sum(s[k] for s in last) / float(num_step) for k in range(2))


# ---------------------------------- main ------------------------------------ #

if __name__ == "__main__":
    B, S_IMG, S_Q, H, F = 2, 16, 8, 32, 128
    ATT_STEP = 2
    NUM_MOPS = sum(i + 1 for i in range(ATT_STEP))   # DAG cells: 1 + 2 = 3

    key = jax.random.PRNGKey(0)
    k_i0, k_q0, k_i1, k_q1, k_ih, k_qh, k_par = jax.random.split(key, 7)

    img_pre_prev = jax.random.normal(k_i0, (B, S_IMG, H), jnp.float32)
    ques_pre_prev = jax.random.normal(k_q0, (B, S_Q, H), jnp.float32)
    img_prev = jax.random.normal(k_i1, (B, S_IMG, H), jnp.float32)
    ques_prev = jax.random.normal(k_q1, (B, S_Q, H), jnp.float32)

    # padding masks: 1.0 where padded
    img_mask = (jnp.arange(S_IMG)[None, :]
                >= jnp.array([S_IMG, 12])[:, None]).astype(jnp.float32)
    ques_mask = (jnp.arange(S_Q)[None, :]
                 >= jnp.array([S_Q, 5])[:, None]).astype(jnp.float32)

    i_hot_vec = jax.nn.softmax(
        jax.random.normal(k_ih, (NUM_MOPS, 3), jnp.float32), axis=-1)
    q_hot_vec = jax.nn.softmax(
        jax.random.normal(k_qh, (NUM_MOPS, 3), jnp.float32), axis=-1)

    params = init_params(k_par, H, F, NUM_MOPS)
    pparams = pack_params(params, ATT_STEP)

    f_pre_prev = (img_pre_prev, ques_pre_prev)
    f_prev = (img_prev, ques_prev)
    masks = (img_mask, ques_mask)

    out_i, out_q = cell_forward(pparams, f_pre_prev, f_prev, masks,
                                i_hot_vec, q_hot_vec, ATT_STEP)
    out_i, out_q = jax.block_until_ready((out_i, out_q))

    # sanity check against pure-JAX reference (f32; approx-reciprocal softmax,
    # folded output projections and LN amplification of rounding differences
    # motivate a slightly loose tolerance)
    ref_i, ref_q = _ref_cell(params, f_pre_prev, f_prev, masks,
                             i_hot_vec, q_hot_vec, ATT_STEP)
    assert out_i.shape == (B, S_IMG, H) and out_q.shape == (B, S_Q, H)
    assert jnp.allclose(out_i, ref_i, atol=5e-3, rtol=5e-3), \
        float(jnp.max(jnp.abs(out_i - ref_i)))
    assert jnp.allclose(out_q, ref_q, atol=5e-3, rtol=5e-3), \
        float(jnp.max(jnp.abs(out_q - ref_q)))

    print("KERNEL_OK")
</pallas_src>

<mosaic_0001>
module attributes {stable_mosaic.version = 11 : i64} {
  func.func @_init_stream_kernel(%arg0: memref<32x32xf32, #tpu.memory_space<vmem>>, %arg1: memref<32x32xf32, #tpu.memory_space<vmem>>, %arg2: memref<32x128xf32, #tpu.memory_space<vmem>>, %arg3: memref<1x128xf32, #tpu.memory_space<vmem>>, %arg4: memref<128x32xf32, #tpu.memory_space<vmem>>, %arg5: memref<1x32xf32, #tpu.memory_space<vmem>>, %arg6: memref<32x128xf32, #tpu.memory_space<vmem>>, %arg7: memref<1x128xf32, #tpu.memory_space<vmem>>, %arg8: memref<128x32xf32, #tpu.memory_space<vmem>>, %arg9: memref<1x32xf32, #tpu.memory_space<vmem>>, %arg10: memref<32x32xf32, #tpu.memory_space<vmem>>) attributes {dimension_semantics = [], scalar_prefetch = 0 : i64, scratch_operands = 0 : i64, tpu.core_type = #tpu.core_type<tc>} {
    %c0 = arith.constant 0 : index
    %c0_0 = arith.constant 0 : index
    %0 = vector.load %arg0[%c0, %c0_0] : memref<32x32xf32, #tpu.memory_space<vmem>>, vector<32x32xf32>
    %c0_1 = arith.constant 0 : index
    %c0_2 = arith.constant 0 : index
    %1 = vector.load %arg2[%c0_1, %c0_2] : memref<32x128xf32, #tpu.memory_space<vmem>>, vector<32x128xf32>
    %cst = arith.constant dense<0.000000e+00> : vector<32x128xf32>
    %2 = tpu.matmul %0, %1, %cst {dimension_numbers = #tpu.dot_dimension_numbers<[1], [0], [0], [1], [0, 0, 1, 1], [], []>} : vector<32x32xf32>, vector<32x128xf32>, vector<32x128xf32> -> vector<32x128xf32>
    %c0_3 = arith.constant 0 : index
    %c0_4 = arith.constant 0 : index
    %3 = vector.load %arg3[%c0_3, %c0_4] : memref<1x128xf32, #tpu.memory_space<vmem>>, vector<1x128xf32>
    %4 = vector.broadcast %3 : vector<1x128xf32> to vector<32x128xf32>
    %5 = arith.addf %2, %4 : vector<32x128xf32>
    %cst_5 = arith.constant 0.000000e+00 : f32
    %6 = vector.broadcast %cst_5 : f32 to vector<32x128xf32>
    %7 = arith.maximumf %5, %6 : vector<32x128xf32>
    %c0_6 = arith.constant 0 : index
    %c0_7 = arith.constant 0 : index
    %8 = vector.load %arg4[%c0_6, %c0_7] : memref<128x32xf32, #tpu.memory_space<vmem>>, vector<128x32xf32>
    %cst_8 = arith.constant dense<0.000000e+00> : vector<32x32xf32>
    %9 = tpu.matmul %7, %8, %cst_8 {dimension_numbers = #tpu.dot_dimension_numbers<[1], [0], [0], [1], [0, 0, 1, 1], [], []>} : vector<32x128xf32>, vector<128x32xf32>, vector<32x32xf32> -> vector<32x32xf32>
    %c0_9 = arith.constant 0 : index
    %c0_10 = arith.constant 0 : index
    %10 = vector.load %arg5[%c0_9, %c0_10] : memref<1x32xf32, #tpu.memory_space<vmem>>, vector<1x32xf32>
    %11 = vector.broadcast %10 : vector<1x32xf32> to vector<32x32xf32>
    %12 = arith.addf %9, %11 : vector<32x32xf32>
    %c0_11 = arith.constant 0 : index
    %c0_12 = arith.constant 0 : index
    %13 = vector.load %arg1[%c0_11, %c0_12] : memref<32x32xf32, #tpu.memory_space<vmem>>, vector<32x32xf32>
    %c0_13 = arith.constant 0 : index
    %c0_14 = arith.constant 0 : index
    %14 = vector.load %arg6[%c0_13, %c0_14] : memref<32x128xf32, #tpu.memory_space<vmem>>, vector<32x128xf32>
    %cst_15 = arith.constant dense<0.000000e+00> : vector<32x128xf32>
    %15 = tpu.matmul %13, %14, %cst_15 {dimension_numbers = #tpu.dot_dimension_numbers<[1], [0], [0], [1], [0, 0, 1, 1], [], []>} : vector<32x32xf32>, vector<32x128xf32>, vector<32x128xf32> -> vector<32x128xf32>
    %c0_16 = arith.constant 0 : index
    %c0_17 = arith.constant 0 : index
    %16 = vector.load %arg7[%c0_16, %c0_17] : memref<1x128xf32, #tpu.memory_space<vmem>>, vector<1x128xf32>
    %17 = vector.broadcast %16 : vector<1x128xf32> to vector<32x128xf32>
    %18 = arith.addf %15, %17 : vector<32x128xf32>
    %cst_18 = arith.constant 0.000000e+00 : f32
    %19 = vector.broadcast %cst_18 : f32 to vector<32x128xf32>
    %20 = arith.maximumf %18, %19 : vector<32x128xf32>
    %c0_19 = arith.constant 0 : index
    %c0_20 = arith.constant 0 : index
    %21 = vector.load %arg8[%c0_19, %c0_20] : memref<128x32xf32, #tpu.memory_space<vmem>>, vector<128x32xf32>
    %cst_21 = arith.constant dense<0.000000e+00> : vector<32x32xf32>
    %22 = tpu.matmul %20, %21, %cst_21 {dimension_numbers = #tpu.dot_dimension_numbers<[1], [0], [0], [1], [0, 0, 1, 1], [], []>} : vector<32x128xf32>, vector<128x32xf32>, vector<32x32xf32> -> vector<32x32xf32>
    %c0_22 = arith.constant 0 : index
    %c0_23 = arith.constant 0 : index
    %23 = vector.load %arg9[%c0_22, %c0_23] : memref<1x32xf32, #tpu.memory_space<vmem>>, vector<1x32xf32>
    %24 = vector.broadcast %23 : vector<1x32xf32> to vector<32x32xf32>
    %25 = arith.addf %22, %24 : vector<32x32xf32>
    %26 = arith.addf %12, %25 : vector<32x32xf32>
    %cst_24 = arith.constant 5.000000e-01 : f32
    %27 = vector.broadcast %cst_24 : f32 to vector<32x32xf32>
    %28 = arith.mulf %27, %26 : vector<32x32xf32>
    %c0_25 = arith.constant 0 : index
    %c0_26 = arith.constant 0 : index
    %29 = vector.load %arg10[%c0_25, %c0_26] : memref<32x32xf32, #tpu.memory_space<vmem>>, vector<32x32xf32>
    tpu.vector_store %arg10[%c0_25, %c0_26], %28 {strides = array<i32>} : memref<32x32xf32, #tpu.memory_space<vmem>>, vector<32x32xf32>,
    return
  }
}

</mosaic_0001>

<llo_original>
// kernel: tpu_custom_call.1
$region0: #{tpu_custom_call.1}
  #allocation0 [shape = 'u32[]', space=smem, size = 0x4, offset = 0x4, fixed_abs, tag = 'smem constant byte address 0x4 - core index']
  #allocation1 [shape = 'u32[72,128]{1,0:T(1,128)}', space=vmem, size = 0x9000, scoped, tag = 'internal scratch']
  %s0 = inlined_call_operand.vmem [shape: f32[32,32], index: 0, kind: input, shape index: {}]
  %s1 = inlined_call_operand.vmem [shape: f32[32,32], index: 1, kind: input, shape index: {}]
  %s2 = inlined_call_operand.vmem [shape: f32[32,128], index: 2, kind: input, shape index: {}]
  %s3 = inlined_call_operand.vmem [shape: f32[1,128], index: 3, kind: input, shape index: {}]
  %s4 = inlined_call_operand.vmem [shape: f32[128,32], index: 4, kind: input, shape index: {}]
  %s5 = inlined_call_operand.vmem [shape: f32[1,32], index: 5, kind: input, shape index: {}]
  %s6 = inlined_call_operand.vmem [shape: f32[32,128], index: 6, kind: input, shape index: {}]
  %s7 = inlined_call_operand.vmem [shape: f32[1,128], index: 7, kind: input, shape index: {}]
  %s8 = inlined_call_operand.vmem [shape: f32[128,32], index: 8, kind: input, shape index: {}]
  %s9 = inlined_call_operand.vmem [shape: f32[1,32], index: 9, kind: input, shape index: {}]
  %s10 = inlined_call_operand.hbm [shape: f32[32,32], index: 10, kind: output, shape index: {}]
  %s11 = sld [smem:[#allocation0]]
  $region50: #{tpu_custom_call.1} parent=0
    _
  %s13 = ssub.s32 1, %s11
  %s14 = scalar_select 0, %s13, %s11
  $region1: #{tpu_custom_call.1} parent=0
    #allocation2 [shape = 'u8[16384]{0}', space=vmem, size = 0x4000, scoped, tag = 'output window, operand 0, single buffered']
    #allocation3 [shape = 's32[1]{0}', space=sflag, size = 0x4, scoped, tag = 'scoped memory for tpu_custom_call.1']
    %15 = vsyncpa [#allocation3], 0
    // Predicated region
    $region2: #{tpu_custom_call.1} parent=1 // pred_check
      _
    $region3: #{tpu_custom_call.1} parent=1 // pred_check_branch
      %17 = sbr.rel (0) target = $region5
    $region4: #{tpu_custom_call.1} parent=1 // pred_region
      _
    $region5: #{tpu_custom_call.1} parent=1 // pred_fallthru
      _
    // Predicated region
    $region6: #{tpu_custom_call.1} parent=1 // pred_check
      _
    $region7: #{tpu_custom_call.1} parent=1 // pred_check_branch
      %19 = sbr.rel (0) target = $region9
    $region8: #{tpu_custom_call.1} parent=1 // pred_region
      _
    $region9: #{tpu_custom_call.1} parent=1 // pred_fallthru
      _
    // Predicated region
    $region10: #{tpu_custom_call.1} parent=1 // pred_check
      _
    $region11: #{tpu_custom_call.1} parent=1 // pred_check_branch
      %21 = sbr.rel (0) target = $region13
    $region12: #{tpu_custom_call.1} parent=1 // pred_region
      _
    $region13: #{tpu_custom_call.1} parent=1 // pred_fallthru
      _
    // Predicated region
    $region14: #{tpu_custom_call.1} parent=1 // pred_check
      _
    $region15: #{tpu_custom_call.1} parent=1 // pred_check_branch
      %23 = sbr.rel (0) target = $region17
    $region16: #{tpu_custom_call.1} parent=1 // pred_region
      _
    $region17: #{tpu_custom_call.1} parent=1 // pred_fallthru
      _
    // Predicated region
    $region18: #{tpu_custom_call.1} parent=1 // pred_check
      _
    $region19: #{tpu_custom_call.1} parent=1 // pred_check_branch
      %25 = sbr.rel (0) target = $region21
    $region20: #{tpu_custom_call.1} parent=1 // pred_region
      _
    $region21: #{tpu_custom_call.1} parent=1 // pred_fallthru
      _
    // Predicated region
    $region22: #{tpu_custom_call.1} parent=1 // pred_check
      _
    $region23: #{tpu_custom_call.1} parent=1 // pred_check_branch
      %27 = sbr.rel (0) target = $region25
    $region24: #{tpu_custom_call.1} parent=1 // pred_region
      _
    $region25: #{tpu_custom_call.1} parent=1 // pred_fallthru
      _
    // Predicated region
    $region26: #{tpu_custom_call.1} parent=1 // pred_check
      _
    $region27: #{tpu_custom_call.1} parent=1 // pred_check_branch
      %29 = sbr.rel (0) target = $region29
    $region28: #{tpu_custom_call.1} parent=1 // pred_region
      _
    $region29: #{tpu_custom_call.1} parent=1 // pred_fallthru
      _
    // Predicated region
    $region30: #{tpu_custom_call.1} parent=1 // pred_check
      _
    $region31: #{tpu_custom_call.1} parent=1 // pred_check_branch
      %31 = sbr.rel (0) target = $region33
    $region32: #{tpu_custom_call.1} parent=1 // pred_region
      _
    $region33: #{tpu_custom_call.1} parent=1 // pred_fallthru
      _
    // Predicated region
    $region34: #{tpu_custom_call.1} parent=1 // pred_check
      _
    $region35: #{tpu_custom_call.1} parent=1 // pred_check_branch
      %33 = sbr.rel (0) target = $region37
    $region36: #{tpu_custom_call.1} parent=1 // pred_region
      _
    $region37: #{tpu_custom_call.1} parent=1 // pred_fallthru
      _
    // Predicated region
    $region38: #{tpu_custom_call.1} parent=1 // pred_check
      _
    $region39: #{tpu_custom_call.1} parent=1 // pred_check_branch
      %35 = sbr.rel (0) target = $region41
    $region40: #{tpu_custom_call.1} parent=1 // pred_region
      _
    $region41: #{tpu_custom_call.1} parent=1 // pred_fallthru
      _
    %v36 = vld [vmem:[%s0] sm:$0xff]
    %v37 = vld [vmem:[%s0 + $0x8] sm:$0xff]
    %v38 = vld [vmem:[%s0 + $0x10] sm:$0xff]
    %v39 = vld [vmem:[%s0 + $0x18] sm:$0xff]
    %v40 = vld [vmem:[%s2] sm:$0xff]
    %v41 = vld [vmem:[%s2 + $0x8] sm:$0xff]
    %v42 = vld [vmem:[%s2 + $0x10] sm:$0xff]
    %v43 = vld [vmem:[%s2 + $0x18] sm:$0xff]
    %v44 = vld [vmem:[%s3] sm:$0x1]
    %v46 = vperm.slane %v44, 0
    %vm48 = vcmask 261120
    %v50 = vsel %vm48, %v36, 0
    %v53 = vsel %vm48, %v37, 0
    %v56 = vsel %vm48, %v38, 0
    %v59 = vsel %vm48, %v39, 0
    %61 = vmatpush.msra.mxu0 0.0
    %62 = vmatpush.msra.mxu0 0.0
    %63 = vmatpush.msra.mxu0 0.0
    %64 = vmatpush.msra.mxu0 0.0
    %65 = vmatpush.msra.mxu0 0.0
    %66 = vmatpush.msra.mxu0 0.0
    %67 = vmatpush.msra.mxu0 0.0
    %68 = vmatpush.msra.mxu0 0.0
    %69 = vmatpush.msra.mxu0 0.0
    %70 = vmatpush.msra.mxu0 0.0
    %71 = vmatpush.msra.mxu0 0.0
    %72 = vmatpush.msra.mxu0 0.0
    %73 = vmatpush.msra.mxu0 %v43
    %74 = vmatpush.msra.mxu0 %v42
    %75 = vmatpush.msra.mxu0 %v41
    %76 = vmatpush.msra.mxu0 %v40
    %77 = vmatmul.f32.gmra.mxu0 %v50
    %v78 = vpop.f32.mrf.mxu0
    %v79 = vadd.f32 %v46, %v78
    %80 = vmatmul.f32.gmra.mxu0 %v53
    %v81 = vpop.f32.mrf.mxu0
    %v82 = vadd.f32 %v46, %v81
    %83 = vmatmul.f32.gmra.mxu0 %v56
    %v84 = vpop.f32.mrf.mxu0
    %v85 = vadd.f32 %v46, %v84
    %86 = vmatmul.f32.gmra.mxu0 %v59
    %v87 = vpop.f32.mrf.mxu0
    %v88 = vadd.f32 %v46, %v87
    %89 = vdwg.mxu0
    %v90 = vmax.f32 %v79, 0.0
    %v91 = vmax.f32 %v82, 0.0
    %v92 = vmax.f32 %v85, 0.0
    %v93 = vmax.f32 %v88, 0.0
    %v94 = vld [vmem:[%s4] sm:$0xff]
    %v95 = vld [vmem:[%s4 + $0x8] sm:$0xff]
    %v96 = vld [vmem:[%s4 + $0x10] sm:$0xff]
    %v97 = vld [vmem:[%s4 + $0x18] sm:$0xff]
    %v98 = vld [vmem:[%s4 + $0x20] sm:$0xff]
    %v99 = vld [vmem:[%s4 + $0x28] sm:$0xff]
    %v100 = vld [vmem:[%s4 + $0x30] sm:$0xff]
    %v101 = vld [vmem:[%s4 + $0x38] sm:$0xff]
    %v102 = vld [vmem:[%s4 + $0x40] sm:$0xff]
    %v103 = vld [vmem:[%s4 + $0x48] sm:$0xff]
    %v104 = vld [vmem:[%s4 + $0x50] sm:$0xff]
    %v105 = vld [vmem:[%s4 + $0x58] sm:$0xff]
    %v106 = vld [vmem:[%s4 + $0x60] sm:$0xff]
    %v107 = vld [vmem:[%s4 + $0x68] sm:$0xff]
    %v108 = vld [vmem:[%s4 + $0x70] sm:$0xff]
    %v109 = vld [vmem:[%s4 + $0x78] sm:$0xff]
    %v110 = vld [vmem:[%s5] sm:$0x1]
    %v112 = vperm.slane %v110, 0
    %114 = vmatpush.msra.mxu0 %v109
    %115 = vmatpush.msra.mxu0 %v108
    %116 = vmatpush.msra.mxu0 %v107
    %117 = vmatpush.msra.mxu0 %v106
    %118 = vmatpush.msra.mxu0 %v105
    %119 = vmatpush.msra.mxu0 %v104
    %120 = vmatpush.msra.mxu0 %v103
    %121 = vmatpush.msra.mxu0 %v102
    %122 = vmatpush.msra.mxu0 %v101
    %123 = vmatpush.msra.mxu0 %v100
    %124 = vmatpush.msra.mxu0 %v99
    %125 = vmatpush.msra.mxu0 %v98
    %126 = vmatpush.msra.mxu0 %v97
    %127 = vmatpush.msra.mxu0 %v96
    %128 = vmatpush.msra.mxu0 %v95
    %129 = vmatpush.msra.mxu0 %v94
    %130 = vmatmul.f32.gmra.mxu0 %v90
    %v131 = vpop.f32.mrf.mxu0
    %v132 = vadd.f32 %v112, %v131
    %133 = vmatmul.f32.gmra.mxu0 %v91
    %v134 = vpop.f32.mrf.mxu0
    %v135 = vadd.f32 %v112, %v134
    %136 = vmatmul.f32.gmra.mxu0 %v92
    %v137 = vpop.f32.mrf.mxu0
    %v138 = vadd.f32 %v112, %v137
    %139 = vmatmul.f32.gmra.mxu0 %v93
    %v140 = vpop.f32.mrf.mxu0
    %v141 = vadd.f32 %v112, %v140
    %142 = vdwg.mxu0
    %v143 = vld [vmem:[%s1] sm:$0xff]
    %v144 = vld [vmem:[%s1 + $0x8] sm:$0xff]
    %v145 = vld [vmem:[%s1 + $0x10] sm:$0xff]
    %v146 = vld [vmem:[%s1 + $0x18] sm:$0xff]
    %v147 = vld [vmem:[%s6] sm:$0xff]
    %v148 = vld [vmem:[%s6 + $0x8] sm:$0xff]
    %v149 = vld [vmem:[%s6 + $0x10] sm:$0xff]
    %v150 = vld [vmem:[%s6 + $0x18] sm:$0xff]
    %v151 = vld [vmem:[%s7] sm:$0x1]
    %v153 = vperm.slane %v151, 0
    %v156 = vsel %vm48, %v143, 0
    %v159 = vsel %vm48, %v144, 0
    %v162 = vsel %vm48, %v145, 0
    %v165 = vsel %vm48, %v146, 0
    %167 = vmatpush.msra.mxu0 0.0
    %168 = vmatpush.msra.mxu0 0.0
    %169 = vmatpush.msra.mxu0 0.0
    %170 = vmatpush.msra.mxu0 0.0
    %171 = vmatpush.msra.mxu0 0.0
    %172 = vmatpush.msra.mxu0 0.0
    %173 = vmatpush.msra.mxu0 0.0
    %174 = vmatpush.msra.mxu0 0.0
    %175 = vmatpush.msra.mxu0 0.0
    %176 = vmatpush.msra.mxu0 0.0
    %177 = vmatpush.msra.mxu0 0.0
    %178 = vmatpush.msra.mxu0 0.0
    %179 = vmatpush.msra.mxu0 %v150
    %180 = vmatpush.msra.mxu0 %v149
    %181 = vmatpush.msra.mxu0 %v148
    %182 = vmatpush.msra.mxu0 %v147
    %183 = vmatmul.f32.gmra.mxu0 %v156
    %v184 = vpop.f32.mrf.mxu0
    %v185 = vadd.f32 %v153, %v184
    %186 = vmatmul.f32.gmra.mxu0 %v159
    %v187 = vpop.f32.mrf.mxu0
    %v188 = vadd.f32 %v153, %v187
    %189 = vmatmul.f32.gmra.mxu0 %v162
    %v190 = vpop.f32.mrf.mxu0
    %v191 = vadd.f32 %v153, %v190
    %192 = vmatmul.f32.gmra.mxu0 %v165
    %v193 = vpop.f32.mrf.mxu0
    %v194 = vadd.f32 %v153, %v193
    %195 = vdwg.mxu0
    %v196 = vmax.f32 %v185, 0.0
    %v197 = vmax.f32 %v188, 0.0
    %v198 = vmax.f32 %v191, 0.0
    %v199 = vmax.f32 %v194, 0.0
    %v200 = vld [vmem:[%s8] sm:$0xff]
    %v201 = vld [vmem:[%s8 + $0x8] sm:$0xff]
    %v202 = vld [vmem:[%s8 + $0x10] sm:$0xff]
    %v203 = vld [vmem:[%s8 + $0x18] sm:$0xff]
    %v204 = vld [vmem:[%s8 + $0x20] sm:$0xff]
    %v205 = vld [vmem:[%s8 + $0x28] sm:$0xff]
    %v206 = vld [vmem:[%s8 + $0x30] sm:$0xff]
    %v207 = vld [vmem:[%s8 + $0x38] sm:$0xff]
    %v208 = vld [vmem:[%s8 + $0x40] sm:$0xff]
    %v209 = vld [vmem:[%s8 + $0x48] sm:$0xff]
    %v210 = vld [vmem:[%s8 + $0x50] sm:$0xff]
    %v211 = vld [vmem:[%s8 + $0x58] sm:$0xff]
    %v212 = vld [vmem:[%s8 + $0x60] sm:$0xff]
    %v213 = vld [vmem:[%s8 + $0x68] sm:$0xff]
    %v214 = vld [vmem:[%s8 + $0x70] sm:$0xff]
    %v215 = vld [vmem:[%s8 + $0x78] sm:$0xff]
    %v216 = vld [vmem:[%s9] sm:$0x1]
    %v218 = vperm.slane %v216, 0
    %220 = vmatpush.msra.mxu0 %v215
    %221 = vmatpush.msra.mxu0 %v214
    %222 = vmatpush.msra.mxu0 %v213
    %223 = vmatpush.msra.mxu0 %v212
    %224 = vmatpush.msra.mxu0 %v211
    %225 = vmatpush.msra.mxu0 %v210
    %226 = vmatpush.msra.mxu0 %v209
    %227 = vmatpush.msra.mxu0 %v208
    %228 = vmatpush.msra.mxu0 %v207
    %229 = vmatpush.msra.mxu0 %v206
    %230 = vmatpush.msra.mxu0 %v205
    %231 = vmatpush.msra.mxu0 %v204
    %232 = vmatpush.msra.mxu0 %v203
    %233 = vmatpush.msra.mxu0 %v202
    %234 = vmatpush.msra.mxu0 %v201
    %235 = vmatpush.msra.mxu0 %v200
    %236 = vmatmul.f32.gmra.mxu0 %v196
    %v237 = vpop.f32.mrf.mxu0
    %v238 = vadd.f32 %v218, %v237
    %239 = vmatmul.f32.gmra.mxu0 %v197
    %v240 = vpop.f32.mrf.mxu0
    %v241 = vadd.f32 %v218, %v240
    %242 = vmatmul.f32.gmra.mxu0 %v198
    %v243 = vpop.f32.mrf.mxu0
    %v244 = vadd.f32 %v218, %v243
    %245 = vmatmul.f32.gmra.mxu0 %v199
    %v246 = vpop.f32.mrf.mxu0
    %v247 = vadd.f32 %v218, %v246
    %248 = vdwg.mxu0
    %v249 = vadd.f32 %v132, %v238
    %v250 = vadd.f32 %v135, %v241
    %v251 = vadd.f32 %v138, %v244
    %v252 = vadd.f32 %v141, %v247
    %v253 = vmul.f32 %v249, 0.5
    %v254 = vmul.f32 %v250, 0.5
    %v255 = vmul.f32 %v251, 0.5
    %v256 = vmul.f32 %v252, 0.5
    %257 = vst.msk [vmem:[#allocation2] sm:$0xff] %vm48, %v253
    %258 = vst.msk [vmem:[#allocation2 + $0x8] sm:$0xff] %vm48, %v254
    %259 = vst.msk [vmem:[#allocation2 + $0x10] sm:$0xff] %vm48, %v255
    %260 = vst.msk [vmem:[#allocation2 + $0x18] sm:$0xff] %vm48, %v256
    // Predicated region
    $region42: #{tpu_custom_call.1} parent=1 // pred_check
      _
    $region43: #{tpu_custom_call.1} parent=1 // pred_check_branch
      %262 = sbr.rel (0) target = $region45
    $region44: #{tpu_custom_call.1} parent=1 // pred_region
      %264 = vsyncadd [#allocation3], 0
      %s265 = sshll.u32 [#allocation2], 4
      %s266 = int_to_ptr.vmem [resolvable:$true] %s265
      %s267 = sshll.u32 %s10, 4
      %s268 = int_to_ptr.hbm [resolvable:$true] %s267
      %273 = dma.vmem_to_hbm [thread:$0]  %s266, 512, %s268, [#allocation3], 128, 128, 8
    $region45: #{tpu_custom_call.1} parent=1 // pred_fallthru
      _
    // Predicated region
    $region46: #{tpu_custom_call.1} parent=1 // pred_check
      _
    $region47: #{tpu_custom_call.1} parent=1 // pred_check_branch
      %275 = sbr.rel (0) target = $region49
    $region48: #{tpu_custom_call.1} parent=1 // pred_region
      %277 = dma.done [#allocation3], 512
    $region49: #{tpu_custom_call.1} parent=1 // pred_fallthru
      _
    %278 = vsyncpa [#allocation3], 1

</llo_original>
